<compile_context>
chip_gen: v6e
topology: v6e:2x2x1
jax: 0.10.0
libtpu: 0.0.40
codegen_flags: <defaults>
</compile_context>

<pallas_src>
import functools

import numpy as np
import jax
import jax.numpy as jnp
from jax.experimental import pallas as pl
from jax.experimental.pallas import tpu as pltpu

COMPUTE_DTYPE = jnp.bfloat16      # matmul operand dtype (accumulation is f32)
NUM_GAZE_CHANNELS = 8             # voronoi side-channel maps per frame


def _vmem_limit_bytes():
    """~half of physical VMEM: ~64 MiB on v5e/v6e (128 MiB), ~32 MiB on v7x."""
    try:
        cap = int(pltpu.get_tpu_info().vmem_capacity_bytes)
        return max(32 * 1024 * 1024, min(cap // 2, 96 * 1024 * 1024))
    except Exception:  # conservative fallback, safe on every generation
        return 32 * 1024 * 1024


# ----------------------------------------------------------------------------
# Host-side constant builders (tiny, computed once in numpy)
# ----------------------------------------------------------------------------
def _bilinear_matrix(in_size, out_size):
    """PyTorch Upsample(mode='bilinear', align_corners=False) 1-D weights."""
    m = np.zeros((out_size, in_size), np.float32)
    if in_size == 1:
        m[:, 0] = 1.0
        return m
    scale = in_size / out_size
    for i in range(out_size):
        src = max((i + 0.5) * scale - 0.5, 0.0)
        i0 = min(int(np.floor(src)), in_size - 1)
        i1 = min(i0 + 1, in_size - 1)
        lam = src - i0
        m[i, i0] += 1.0 - lam
        m[i, i1] += lam
    return m


def _adaptive_pool_matrix(in_size, out_size):
    """torch.nn.AdaptiveAvgPool2d 1-D averaging weights."""
    m = np.zeros((out_size, in_size), np.float32)
    for i in range(out_size):
        start = (i * in_size) // out_size
        end = -((-(i + 1) * in_size) // out_size)      # ceil
        m[i, start:end] = 1.0 / (end - start)
    return m


def _flat_bilinear_mat(h_in, w_in, h_out, w_out):
    """Fused 2-D bilinear upsample on the flattened H*W axis: (h_in*w_in, h_out*w_out)."""
    uh = _bilinear_matrix(h_in, h_out)
    uw = _bilinear_matrix(w_in, w_out)
    return np.kron(uh.T, uw.T).astype(np.float32)


def _flat_pool_mat(h_in, w_in, h_out, w_out):
    """AdaptiveAvgPool2d on the flattened axis: (h_in*w_in, h_out*w_out)."""
    ph = _adaptive_pool_matrix(h_in, h_out)
    pw = _adaptive_pool_matrix(w_in, w_out)
    return np.kron(ph.T, pw.T).astype(np.float32)


def _coord_grid_flat(h, w):
    """torch.meshgrid(linspace(0,1,h), linspace(0,1,w), 'ij') flattened: (2, h*w)."""
    ys = np.linspace(0.0, 1.0, h, dtype=np.float32)
    xs = np.linspace(0.0, 1.0, w, dtype=np.float32)
    yv, xv = np.meshgrid(ys, xs, indexing="ij")
    return np.stack([xv.reshape(-1), yv.reshape(-1)], axis=0).astype(np.float32)


def _pick_frames_per_block(bt, lane_sizes):
    """Smallest divisor FB of BT whose per-block lane extents are all multiples
    of 128 (lane-dense blocks, widest possible parallel grid for v7x's 2 TCs).
    Falls back to FB == BT, where each block equals the full lane extent."""
    for fb in range(1, bt + 1):
        if bt % fb:
            continue
        if fb == bt or all((fb * s) % 128 == 0 for s in lane_sizes):
            return fb
    return bt


def _to_channel_major(x):
    """(B, T, C, H, W) -> (C, B*T*H*W); frame-major then spatial on the lane axis."""
    B, T, C, H, W = x.shape
    return jnp.transpose(x.reshape(B * T, C, H * W), (1, 0, 2)).reshape(C, B * T * H * W)


# ----------------------------------------------------------------------------
# Fused decoder-unit kernel (one grid step == one block of FB frames)
# ----------------------------------------------------------------------------
def _fused_du_kernel(num_gaze, has_skip, geo_ref, prev_ref, *rest):
    if has_skip:
        (skip_ref, of_ref, kpool_ref, ku_ref, wp_ref, ws_ref, wsc_ref,
         b_ref, out_ref) = rest
    else:
        (of_ref, kpool_ref, ku_ref, wp_ref, wsc_ref, b_ref, out_ref) = rest
        skip_ref = None
        ws_ref = None

    G = num_gaze
    # geo rows: [xv, yv, gx_0..gx_{G-1}, gy_0.., st_0.., di]; all (1, FB*HW) f32.
    xv = geo_ref[0:1, :]
    yv = geo_ref[1:2, :]
    di = geo_ref[2 + 3 * G:3 + 3 * G, :]

    def gx(g): return geo_ref[2 + g:3 + g, :]
    def gy(g): return geo_ref[2 + G + g:3 + G + g, :]
    def st(g): return geo_ref[2 + 2 * G + g:3 + 2 * G + g, :]

    # voronoi: init from gaze point 0, loop over the rest (strict '<' keeps the
    # first minimum, matching torch.min tie-break); single sqrt after the loop.
    dx = xv - gx(0)
    dy = yv - gy(0)
    best_dx, best_dy = dx, dy
    best_st = st(0)
    best_d2 = dx * dx + dy * dy
    for g in range(1, G):
        dx = xv - gx(g)
        dy = yv - gy(g)
        d2 = dx * dx + dy * dy
        upd = d2 < best_d2
        best_dx = jnp.where(upd, dx, best_dx)
        best_dy = jnp.where(upd, dy, best_dy)
        best_st = jnp.where(upd, st(g), best_st)
        best_d2 = jnp.where(upd, d2, best_d2)
    best_d = jnp.sqrt(best_d2)
    s = best_st * di

    # adaptive-avg-pooled optic flow for every frame of the block: one MXU matmul
    # (C_of, FB*HofWof) @ block-diag(I_FB (x) kpool) -> (C_of, FB*HW), f32 acc.
    pooled = jnp.dot(of_ref[...], kpool_ref[...],
                     preferred_element_type=jnp.float32)

    # side-channel stack (8 gaze maps + pooled flow) -> ONE matmul with wsc
    # instead of 8 rank-1 VPU updates.
    sc = jnp.concatenate(
        [best_dx * s, best_dy * s,
         best_dx * best_dx * s, best_dy * best_dy * s,
         best_dx * best_dy * s,
         best_d, best_st, di,
         pooled],
        axis=0).astype(wsc_ref.dtype)                              # (Csc, FB*HW)

    # 1x1 channel mix: the concat([prev, skip?, sc]) is never materialized —
    # the weight matrix is pre-split and each piece applied directly (bf16 MXU).
    y = jnp.dot(wp_ref[...], prev_ref[...], preferred_element_type=jnp.float32)
    if has_skip:
        y = y + jnp.dot(ws_ref[...], skip_ref[...],
                        preferred_element_type=jnp.float32)
    y = y + jnp.dot(wsc_ref[...], sc, preferred_element_type=jnp.float32)
    y = jnp.maximum(y + b_ref[...], 0.0)                           # (Cout, FB*HW)

    # fused bilinear upsample (I_FB (x) (Uh^T (x) Uw^T)): ONE matmul, lane-dense
    # output store.
    z = jnp.dot(y.astype(ku_ref.dtype), ku_ref[...],
                preferred_element_type=jnp.float32)                # (Cout, FB*HoWo)
    out_ref[...] = z.astype(out_ref.dtype)


def decoder_unit_fused(prev_cm, skip, gaze, optic_flow, params, H, W, Hout, Wout,
                       compute_dtype=COMPUTE_DTYPE):
    """One fused decoder unit (all frames, channel-major).

    prev_cm:    (Cp, B*T*H*W)    channel-major previous decoder output
    skip:       (B, T, Cs, H, W) or None
    gaze:       (B, T, G, 4)     (x, y, should_train, dropout)
    optic_flow: (B, T, C_of, Hof, Wof)
    params:     {"w": (Cp+Cs+8+C_of, Cout), "b": (1, Cout)}
    returns     (Cout, B*T*Hout*Wout)  channel-major
    """
    B, T, G, _ = gaze.shape
    BT = B * T
    HW, HoWo = H * W, Hout * Wout
    C_of, Hof, Wof = optic_flow.shape[2:5]
    HWof = Hof * Wof
    Cs = skip.shape[2] if skip is not None else 0
    Cp = prev_cm.shape[0]
    Csc = NUM_GAZE_CHANNELS + C_of
    Cout = params["w"].shape[1]
    assert prev_cm.shape[1] == BT * HW
    assert params["w"].shape[0] == Cp + Cs + Csc

    FB = _pick_frames_per_block(BT, (HW, HoWo, HWof))
    nblocks = BT // FB
    L = FB * HW

    # ---- host-side layout plumbing + tiny constants ----
    # geometry rows: [xv, yv, gx_g, gy_g, st_g, di], broadcast per-frame scalars
    # across that frame's HW lanes (pure broadcast, negligible bytes).
    grid_xy = jnp.asarray(np.tile(_coord_grid_flat(H, W), (1, BT)), jnp.float32)
    gz = gaze.reshape(BT, G, 4).astype(jnp.float32)
    per_frame = jnp.concatenate(
        [gz[:, :, 0].T, gz[:, :, 1].T, gz[:, :, 2].T, gz[:, 0:1, 3].T], axis=0)
    gmaps = jnp.broadcast_to(per_frame[:, :, None],
                             (3 * G + 1, BT, HW)).reshape(3 * G + 1, BT * HW)
    geo = jnp.concatenate([grid_xy, gmaps], axis=0)                # (2+3G+1, BT*HW)

    flow_cm = jnp.transpose(optic_flow.reshape(BT, C_of, HWof),
                            (1, 0, 2)).reshape(C_of, BT * HWof).astype(compute_dtype)
    kpool_bd = np.kron(np.eye(FB, dtype=np.float32), _flat_pool_mat(Hof, Wof, H, W))
    ku_bd = np.kron(np.eye(FB, dtype=np.float32), _flat_bilinear_mat(H, W, Hout, Wout))

    w = params["w"]
    wp = jnp.transpose(w[:Cp]).astype(compute_dtype)               # (Cout, Cp)
    wsc = jnp.transpose(w[Cp + Cs:]).astype(compute_dtype)         # (Cout, Csc)
    b = params["b"].reshape(Cout, 1).astype(jnp.float32)

    inputs = [geo, prev_cm.astype(compute_dtype)]
    in_specs = [
        pl.BlockSpec((2 + 3 * G + 1, L), lambda i: (0, i)),
        pl.BlockSpec((Cp, L), lambda i: (0, i)),
    ]
    if skip is not None:
        skip_cm = _to_channel_major(skip).astype(compute_dtype)
        ws = jnp.transpose(w[Cp:Cp + Cs]).astype(compute_dtype)    # (Cout, Cs)
        inputs.append(skip_cm)
        in_specs.append(pl.BlockSpec((Cs, L), lambda i: (0, i)))
    inputs += [flow_cm, jnp.asarray(kpool_bd, compute_dtype),
               jnp.asarray(ku_bd, compute_dtype), wp]
    in_specs += [
        pl.BlockSpec((C_of, FB * HWof), lambda i: (0, i)),
        pl.BlockSpec((FB * HWof, L), lambda i: (0, 0)),
        pl.BlockSpec((L, FB * HoWo), lambda i: (0, 0)),
        pl.BlockSpec((Cout, Cp), lambda i: (0, 0)),
    ]
    if skip is not None:
        inputs.append(ws)
        in_specs.append(pl.BlockSpec((Cout, Cs), lambda i: (0, 0)))
    inputs += [wsc, b]
    in_specs += [pl.BlockSpec((Cout, Csc), lambda i: (0, 0)),
                 pl.BlockSpec((Cout, 1), lambda i: (0, 0))]

    kernel = functools.partial(_fused_du_kernel, G, skip is not None)
    out_cm = pl.pallas_call(
        kernel,
        out_shape=jax.ShapeDtypeStruct((Cout, BT * HoWo), compute_dtype),
        grid=(nblocks,),
        in_specs=in_specs,
        out_specs=pl.BlockSpec((Cout, FB * HoWo), lambda i: (0, i)),
        compiler_params=pltpu.CompilerParams(
            dimension_semantics=("parallel",),
            vmem_limit_bytes=_vmem_limit_bytes()),
    )(*inputs)
    return out_cm


# ----------------------------------------------------------------------------
# Final bilinear upsample: all C*B*T rows batched, fused constant, parallel grid
# ----------------------------------------------------------------------------
def _flat_resample_kernel(x_ref, ku_ref, o_ref):
    o_ref[...] = jnp.dot(x_ref[...], ku_ref[...],
                         preferred_element_type=jnp.float32).astype(o_ref.dtype)


def final_bilinear_upsample_cm(x_cm, C, B, T, Hin, Win, Hout, Wout,
                               compute_dtype=COMPUTE_DTYPE):
    """x_cm: (C, B*T*Hin*Win) channel-major -> (B, T, C, Hout, Wout) float32."""
    BT = B * T
    HW, HoWo = Hin * Win, Hout * Wout
    R = C * BT
    x_rows = x_cm.reshape(R, HW).astype(compute_dtype)     # pure reshape: row = c*BT + bt
    ku = jnp.asarray(_flat_bilinear_mat(Hin, Win, Hout, Wout), compute_dtype)

    RB = R
    if R > 256:
        for cand in (256, 128, 64, 32, 16, 8):
            if R % cand == 0:
                RB = cand
                break

    out = pl.pallas_call(
        _flat_resample_kernel,
        out_shape=jax.ShapeDtypeStruct((R, HoWo), jnp.float32),
        grid=(R // RB,),
        in_specs=[pl.BlockSpec((RB, HW), lambda i: (i, 0)),
                  pl.BlockSpec((HW, HoWo), lambda i: (0, 0))],
        out_specs=pl.BlockSpec((RB, HoWo), lambda i: (i, 0)),
        compiler_params=pltpu.CompilerParams(
            dimension_semantics=("parallel",),
            vmem_limit_bytes=_vmem_limit_bytes()),
    )(x_rows, ku)
    return jnp.transpose(out.reshape(C, B, T, Hout, Wout), (1, 2, 0, 3, 4))


# ----------------------------------------------------------------------------
# DecoderNet forward
# ----------------------------------------------------------------------------
def decoder_net_forward(encoder_output_dict, side_channel_input, enc_input_shape,
                        params, du_keys, skip_layers_keys,
                        compute_dtype=COMPUTE_DTYPE):
    assert side_channel_input is not None
    gaze = side_channel_input["driver_facing"]
    optic_flow = side_channel_input["optic_flow"]
    B, T = gaze.shape[:2]

    upsm_target_size_list = [
        [encoder_output_dict[k].shape[3], encoder_output_dict[k].shape[4]]
        for k in du_keys
    ]
    upsm_target_size_list.append(
        [int(round(enc_input_shape[3] / 2)), int(round(enc_input_shape[4] / 2))]
    )

    # inter-unit activations stay channel-major (C, BT*H*W): no transposes
    # between units, lane-dense end to end.
    prev_cm = _to_channel_major(encoder_output_dict[du_keys[0]]).astype(compute_dtype)
    for i, du_key in enumerate(du_keys):
        H = encoder_output_dict[du_key].shape[-2]
        W = encoder_output_dict[du_key].shape[-1]
        Hout, Wout = upsm_target_size_list[i + 1]
        skip = (encoder_output_dict[du_key]
                if du_key in skip_layers_keys else None)
        prev_cm = decoder_unit_fused(
            prev_cm, skip, gaze, optic_flow, params[du_key],
            H, W, Hout, Wout, compute_dtype=compute_dtype)

    # final Upsample to the encoder input spatial size (align_corners=False)
    C_last = params[du_keys[-1]]["w"].shape[1]
    Hin, Win = upsm_target_size_list[-1]
    return final_bilinear_upsample_cm(
        prev_cm, C_last, B, T, Hin, Win,
        enc_input_shape[3], enc_input_shape[4], compute_dtype=compute_dtype)


# ----------------------------------------------------------------------------
# main
# ----------------------------------------------------------------------------
if __name__ == "__main__":
    key = jax.random.PRNGKey(0)
    k1, k2, k3, k4, k5, k6 = jax.random.split(key, 6)

    B, T = 2, 2
    H0, W0 = 16, 16
    G = 3                      # gaze points
    C_of = 2                   # optic-flow channels
    enc_input_shape = (B, T, 3, H0, W0)

    encoder_output_dict = {
        "layer3": jax.random.normal(k1, (B, T, 8, 4, 4), jnp.float32),
        "layer2": jax.random.normal(k2, (B, T, 6, 8, 8), jnp.float32),
    }
    side_channel_input = {
        "driver_facing": jax.random.uniform(k3, (B, T, G, 4), jnp.float32),
        "optic_flow": jax.random.normal(k4, (B, T, C_of, H0, W0), jnp.float32),
    }
    du_keys = ["layer3", "layer2"]
    skip_layers_keys = ["layer2"]

    C_sc = NUM_GAZE_CHANNELS + C_of        # driver_facing(8) + pooled optic flow
    params = {
        "layer3": {
            "w": 0.1 * jax.random.normal(k5, (8 + C_sc, 6), jnp.float32),
            "b": jnp.zeros((1, 6), jnp.float32),
        },
        "layer2": {
            "w": 0.1 * jax.random.normal(k6, (6 + 6 + C_sc, 4), jnp.float32),
            "b": jnp.zeros((1, 4), jnp.float32),
        },
    }

    out = decoder_net_forward(
        encoder_output_dict, side_channel_input, enc_input_shape,
        params, du_keys, skip_layers_keys,
    )
    out = jax.block_until_ready(out)
    assert out.shape == (B, T, 4, H0, W0), out.shape
    assert bool(jnp.all(jnp.isfinite(out)))
    print("KERNEL_OK")
</pallas_src>

<mosaic_0001>
module attributes {stable_mosaic.version = 11 : i64} {
  func.func @_fused_du_kernel(%arg0: i32, %arg1: memref<12x64xf32, #tpu.memory_space<vmem>>, %arg2: memref<8x64xbf16, #tpu.memory_space<vmem>>, %arg3: memref<2x1024xbf16, #tpu.memory_space<vmem>>, %arg4: memref<1024x64xbf16, #tpu.memory_space<vmem>>, %arg5: memref<64x256xbf16, #tpu.memory_space<vmem>>, %arg6: memref<6x8xbf16, #tpu.memory_space<vmem>>, %arg7: memref<6x10xbf16, #tpu.memory_space<vmem>>, %arg8: memref<6x1xf32, #tpu.memory_space<vmem>>, %arg9: memref<6x256xbf16, #tpu.memory_space<vmem>>) attributes {dimension_semantics = [#tpu.dimension_semantics<parallel>], iteration_bounds = array<i64: 1>, scalar_prefetch = 0 : i64, scratch_operands = 0 : i64, tpu.core_type = #tpu.core_type<tc>, window_params = [{transform_indices = @transform_0, window_bounds = array<i64: 12, 64>}, {transform_indices = @transform_1, window_bounds = array<i64: 8, 64>}, {transform_indices = @transform_2, window_bounds = array<i64: 2, 1024>}, {pipeline_mode = #tpu.pipeline_mode<synchronous>, transform_indices = @transform_3, window_bounds = array<i64: 1024, 64>}, {pipeline_mode = #tpu.pipeline_mode<synchronous>, transform_indices = @transform_4, window_bounds = array<i64: 64, 256>}, {pipeline_mode = #tpu.pipeline_mode<synchronous>, transform_indices = @transform_5, window_bounds = array<i64: 6, 8>}, {pipeline_mode = #tpu.pipeline_mode<synchronous>, transform_indices = @transform_6, window_bounds = array<i64: 6, 10>}, {pipeline_mode = #tpu.pipeline_mode<synchronous>, transform_indices = @transform_7, window_bounds = array<i64: 6, 1>}, {transform_indices = @transform_8, window_bounds = array<i64: 6, 256>}]} {
    %c0 = arith.constant 0 : index
    %c0_0 = arith.constant 0 : index
    %0 = vector.load %arg1[%c0, %c0_0] : memref<12x64xf32, #tpu.memory_space<vmem>>, vector<1x64xf32>
    %c1 = arith.constant 1 : index
    %c0_1 = arith.constant 0 : index
    %1 = vector.load %arg1[%c1, %c0_1] : memref<12x64xf32, #tpu.memory_space<vmem>>, vector<1x64xf32>
    %c11 = arith.constant 11 : index
    %c0_2 = arith.constant 0 : index
    %2 = vector.load %arg1[%c11, %c0_2] : memref<12x64xf32, #tpu.memory_space<vmem>>, vector<1x64xf32>
    %c2 = arith.constant 2 : index
    %c0_3 = arith.constant 0 : index
    %3 = vector.load %arg1[%c2, %c0_3] : memref<12x64xf32, #tpu.memory_space<vmem>>, vector<1x64xf32>
    %4 = arith.subf %0, %3 : vector<1x64xf32>
    %c5 = arith.constant 5 : index
    %c0_4 = arith.constant 0 : index
    %5 = vector.load %arg1[%c5, %c0_4] : memref<12x64xf32, #tpu.memory_space<vmem>>, vector<1x64xf32>
    %6 = arith.subf %1, %5 : vector<1x64xf32>
    %c8 = arith.constant 8 : index
    %c0_5 = arith.constant 0 : index
    %7 = vector.load %arg1[%c8, %c0_5] : memref<12x64xf32, #tpu.memory_space<vmem>>, vector<1x64xf32>
    %8 = arith.mulf %4, %4 : vector<1x64xf32>
    %9 = arith.mulf %6, %6 : vector<1x64xf32>
    %10 = arith.addf %8, %9 : vector<1x64xf32>
    %c3 = arith.constant 3 : index
    %c0_6 = arith.constant 0 : index
    %11 = vector.load %arg1[%c3, %c0_6] : memref<12x64xf32, #tpu.memory_space<vmem>>, vector<1x64xf32>
    %12 = arith.subf %0, %11 : vector<1x64xf32>
    %c6 = arith.constant 6 : index
    %c0_7 = arith.constant 0 : index
    %13 = vector.load %arg1[%c6, %c0_7] : memref<12x64xf32, #tpu.memory_space<vmem>>, vector<1x64xf32>
    %14 = arith.subf %1, %13 : vector<1x64xf32>
    %15 = arith.mulf %12, %12 : vector<1x64xf32>
    %16 = arith.mulf %14, %14 : vector<1x64xf32>
    %17 = arith.addf %15, %16 : vector<1x64xf32>
    %18 = arith.cmpf olt, %17, %10 : vector<1x64xf32>
    %19 = arith.select %18, %12, %4 : vector<1x64xi1>, vector<1x64xf32>
    %20 = arith.select %18, %14, %6 : vector<1x64xi1>, vector<1x64xf32>
    %c9 = arith.constant 9 : index
    %c0_8 = arith.constant 0 : index
    %21 = vector.load %arg1[%c9, %c0_8] : memref<12x64xf32, #tpu.memory_space<vmem>>, vector<1x64xf32>
    %22 = arith.select %18, %21, %7 : vector<1x64xi1>, vector<1x64xf32>
    %23 = arith.select %18, %17, %10 : vector<1x64xi1>, vector<1x64xf32>
    %c4 = arith.constant 4 : index
    %c0_9 = arith.constant 0 : index
    %24 = vector.load %arg1[%c4, %c0_9] : memref<12x64xf32, #tpu.memory_space<vmem>>, vector<1x64xf32>
    %25 = arith.subf %0, %24 : vector<1x64xf32>
    %c7 = arith.constant 7 : index
    %c0_10 = arith.constant 0 : index
    %26 = vector.load %arg1[%c7, %c0_10] : memref<12x64xf32, #tpu.memory_space<vmem>>, vector<1x64xf32>
    %27 = arith.subf %1, %26 : vector<1x64xf32>
    %28 = arith.mulf %25, %25 : vector<1x64xf32>
    %29 = arith.mulf %27, %27 : vector<1x64xf32>
    %30 = arith.addf %28, %29 : vector<1x64xf32>
    %31 = arith.cmpf olt, %30, %23 : vector<1x64xf32>
    %32 = arith.select %31, %25, %19 : vector<1x64xi1>, vector<1x64xf32>
    %33 = arith.select %31, %27, %20 : vector<1x64xi1>, vector<1x64xf32>
    %c10 = arith.constant 10 : index
    %c0_11 = arith.constant 0 : index
    %34 = vector.load %arg1[%c10, %c0_11] : memref<12x64xf32, #tpu.memory_space<vmem>>, vector<1x64xf32>
    %35 = arith.select %31, %34, %22 : vector<1x64xi1>, vector<1x64xf32>
    %36 = arith.select %31, %30, %23 : vector<1x64xi1>, vector<1x64xf32>
    %37 = math.sqrt %36 : vector<1x64xf32>
    %38 = arith.mulf %35, %2 : vector<1x64xf32>
    %c0_12 = arith.constant 0 : index
    %c0_13 = arith.constant 0 : index
    %39 = vector.load %arg3[%c0_12, %c0_13] : memref<2x1024xbf16, #tpu.memory_space<vmem>>, vector<2x1024xbf16>
    %c0_14 = arith.constant 0 : index
    %c0_15 = arith.constant 0 : index
    %40 = vector.load %arg4[%c0_14, %c0_15] : memref<1024x64xbf16, #tpu.memory_space<vmem>>, vector<1024x64xbf16>
    %cst = arith.constant dense<0.000000e+00> : vector<2x64xf32>
    %41 = tpu.matmul %39, %40, %cst {dimension_numbers = #tpu.dot_dimension_numbers<[1], [0], [0], [1], [0, 0, 1, 1], [], []>} : vector<2x1024xbf16>, vector<1024x64xbf16>, vector<2x64xf32> -> vector<2x64xf32>
    %42 = arith.mulf %32, %38 : vector<1x64xf32>
    %43 = arith.mulf %33, %38 : vector<1x64xf32>
    %44 = arith.mulf %32, %32 : vector<1x64xf32>
    %45 = arith.mulf %44, %38 : vector<1x64xf32>
    %46 = arith.mulf %33, %33 : vector<1x64xf32>
    %47 = arith.mulf %46, %38 : vector<1x64xf32>
    %48 = arith.mulf %32, %33 : vector<1x64xf32>
    %49 = arith.mulf %48, %38 : vector<1x64xf32>
    %50 = tpu.concatenate %42, %43, %45, %47, %49, %37, %35, %2, %41 in 0 : vector<1x64xf32>, vector<1x64xf32>, vector<1x64xf32>, vector<1x64xf32>, vector<1x64xf32>, vector<1x64xf32>, vector<1x64xf32>, vector<1x64xf32>, vector<2x64xf32> -> vector<10x64xf32>
    %51 = arith.truncf %50 : vector<10x64xf32> to vector<10x64xbf16>
    %c0_16 = arith.constant 0 : index
    %c0_17 = arith.constant 0 : index
    %52 = vector.load %arg6[%c0_16, %c0_17] : memref<6x8xbf16, #tpu.memory_space<vmem>>, vector<6x8xbf16>
    %c0_18 = arith.constant 0 : index
    %c0_19 = arith.constant 0 : index
    %53 = vector.load %arg2[%c0_18, %c0_19] : memref<8x64xbf16, #tpu.memory_space<vmem>>, vector<8x64xbf16>
    %cst_20 = arith.constant dense<0.000000e+00> : vector<6x64xf32>
    %54 = tpu.matmul %52, %53, %cst_20 {dimension_numbers = #tpu.dot_dimension_numbers<[1], [0], [0], [1], [0, 0, 1, 1], [], []>} : vector<6x8xbf16>, vector<8x64xbf16>, vector<6x64xf32> -> vector<6x64xf32>
    %c0_21 = arith.constant 0 : index
    %c0_22 = arith.constant 0 : index
    %55 = vector.load %arg7[%c0_21, %c0_22] : memref<6x10xbf16, #tpu.memory_space<vmem>>, vector<6x10xbf16>
    %cst_23 = arith.constant dense<0.000000e+00> : vector<6x64xf32>
    %56 = tpu.matmul %55, %51, %cst_23 {dimension_numbers = #tpu.dot_dimension_numbers<[1], [0], [0], [1], [0, 0, 1, 1], [], []>} : vector<6x10xbf16>, vector<10x64xbf16>, vector<6x64xf32> -> vector<6x64xf32>
    %57 = arith.addf %54, %56 : vector<6x64xf32>
    %c0_24 = arith.constant 0 : index
    %c0_25 = arith.constant 0 : index
    %58 = vector.load %arg8[%c0_24, %c0_25] : memref<6x1xf32, #tpu.memory_space<vmem>>, vector<6x1xf32>
    %59 = vector.broadcast %58 : vector<6x1xf32> to vector<6x64xf32>
    %60 = arith.addf %57, %59 : vector<6x64xf32>
    %cst_26 = arith.constant 0.000000e+00 : f32
    %61 = vector.broadcast %cst_26 : f32 to vector<6x64xf32>
    %62 = arith.maximumf %60, %61 : vector<6x64xf32>
    %63 = arith.truncf %62 : vector<6x64xf32> to vector<6x64xbf16>
    %c0_27 = arith.constant 0 : index
    %c0_28 = arith.constant 0 : index
    %64 = vector.load %arg5[%c0_27, %c0_28] : memref<64x256xbf16, #tpu.memory_space<vmem>>, vector<64x256xbf16>
    %cst_29 = arith.constant dense<0.000000e+00> : vector<6x256xf32>
    %65 = tpu.matmul %63, %64, %cst_29 {dimension_numbers = #tpu.dot_dimension_numbers<[1], [0], [0], [1], [0, 0, 1, 1], [], []>} : vector<6x64xbf16>, vector<64x256xbf16>, vector<6x256xf32> -> vector<6x256xf32>
    %66 = arith.truncf %65 : vector<6x256xf32> to vector<6x256xbf16>
    %c0_30 = arith.constant 0 : index
    %c0_31 = arith.constant 0 : index
    %67 = vector.load %arg9[%c0_30, %c0_31] : memref<6x256xbf16, #tpu.memory_space<vmem>>, vector<6x256xbf16>
    tpu.vector_store %arg9[%c0_30, %c0_31], %66 {strides = array<i32>} : memref<6x256xbf16, #tpu.memory_space<vmem>>, vector<6x256xbf16>,
    return
  }
  func.func @transform_0(%arg0: i32) -> (i32, i32) {
    %c0_i32 = arith.constant 0 : i32
    %c0_i32_0 = arith.constant 0 : i32
    return %c0_i32, %arg0 : i32, i32
  }
  func.func @transform_1(%arg0: i32) -> (i32, i32) {
    %c0_i32 = arith.constant 0 : i32
    %c0_i32_0 = arith.constant 0 : i32
    return %c0_i32, %arg0 : i32, i32
  }
  func.func @transform_2(%arg0: i32) -> (i32, i32) {
    %c0_i32 = arith.constant 0 : i32
    %c0_i32_0 = arith.constant 0 : i32
    return %c0_i32, %arg0 : i32, i32
  }
  func.func @transform_3(%arg0: i32) -> (i32, i32) {
    %c0_i32 = arith.constant 0 : i32
    %c0_i32_0 = arith.constant 0 : i32
    %c0_i32_1 = arith.constant 0 : i32
    return %c0_i32, %c0_i32_0 : i32, i32
  }
  func.func @transform_4(%arg0: i32) -> (i32, i32) {
    %c0_i32 = arith.constant 0 : i32
    %c0_i32_0 = arith.constant 0 : i32
    %c0_i32_1 = arith.constant 0 : i32
    return %c0_i32, %c0_i32_0 : i32, i32
  }
  func.func @transform_5(%arg0: i32) -> (i32, i32) {
    %c0_i32 = arith.constant 0 : i32
    %c0_i32_0 = arith.constant 0 : i32
    %c0_i32_1 = arith.constant 0 : i32
    return %c0_i32, %c0_i32_0 : i32, i32
  }
  func.func @transform_6(%arg0: i32) -> (i32, i32) {
    %c0_i32 = arith.constant 0 : i32
    %c0_i32_0 = arith.constant 0 : i32
    %c0_i32_1 = arith.constant 0 : i32
    return %c0_i32, %c0_i32_0 : i32, i32
  }
  func.func @transform_7(%arg0: i32) -> (i32, i32) {
    %c0_i32 = arith.constant 0 : i32
    %c0_i32_0 = arith.constant 0 : i32
    %c0_i32_1 = arith.constant 0 : i32
    return %c0_i32, %c0_i32_0 : i32, i32
  }
  func.func @transform_8(%arg0: i32) -> (i32, i32) {
    %c0_i32 = arith.constant 0 : i32
    %c0_i32_0 = arith.constant 0 : i32
    return %c0_i32, %arg0 : i32, i32
  }
}

</mosaic_0001>

<llo_original>
// kernel: tpu_custom_call.1
$region0: #{tpu_custom_call.1}
  #allocation0 [shape = 'u32[]', space=smem, size = 0x4, offset = 0x4, fixed_abs, tag = 'smem constant byte address 0x4 - core index']
  #allocation1 [shape = 'u32[144,128]{1,0:T(1,128)}', space=vmem, size = 0x12000, scoped, tag = 'internal scratch']
  %s0 = inlined_call_operand.vmem [shape: f32[12,64], index: 0, kind: input, shape index: {}]
  %s1 = inlined_call_operand.vmem [shape: bf16[8,64], index: 1, kind: input, shape index: {}]
  %s2 = inlined_call_operand.vmem [shape: bf16[2,1024], index: 2, kind: input, shape index: {}]
  %s3 = inlined_call_operand.vmem [shape: bf16[1024,64], index: 3, kind: input, shape index: {}]
  %s4 = inlined_call_operand.vmem [shape: bf16[64,256], index: 4, kind: input, shape index: {}]
  %s5 = inlined_call_operand.vmem [shape: bf16[6,8], index: 5, kind: input, shape index: {}]
  %s6 = inlined_call_operand.vmem [shape: bf16[6,10], index: 6, kind: input, shape index: {}]
  %s7 = inlined_call_operand.vmem [shape: f32[6,1], index: 7, kind: input, shape index: {}]
  %s8 = inlined_call_operand.hbm [shape: bf16[6,256], index: 8, kind: output, shape index: {}]
  %s9 = sld [smem:[#allocation0]]
  $region42: #{tpu_custom_call.1} parent=0
    _
  %s11 = ssub.s32 1, %s9
  %s12 = scalar_select 0, %s11, %s9
  $region1: #{tpu_custom_call.1} parent=0
    #allocation2 [shape = 'u8[4096]{0}', space=vmem, size = 0x1000, scoped, tag = 'output window, operand 0, single buffered']
    #allocation3 [shape = 's32[1]{0}', space=sflag, size = 0x4, scoped, tag = 'scoped memory for tpu_custom_call.1']
    %13 = vsyncpa [#allocation3], 0
    // Predicated region
    $region2: #{tpu_custom_call.1} parent=1 // pred_check
      _
    $region3: #{tpu_custom_call.1} parent=1 // pred_check_branch
      %15 = sbr.rel (0) target = $region5
    $region4: #{tpu_custom_call.1} parent=1 // pred_region
      _
    $region5: #{tpu_custom_call.1} parent=1 // pred_fallthru
      _
    // Predicated region
    $region6: #{tpu_custom_call.1} parent=1 // pred_check
      _
    $region7: #{tpu_custom_call.1} parent=1 // pred_check_branch
      %17 = sbr.rel (0) target = $region9
    $region8: #{tpu_custom_call.1} parent=1 // pred_region
      _
    $region9: #{tpu_custom_call.1} parent=1 // pred_fallthru
      _
    // Predicated region
    $region10: #{tpu_custom_call.1} parent=1 // pred_check
      _
    $region11: #{tpu_custom_call.1} parent=1 // pred_check_branch
      %19 = sbr.rel (0) target = $region13
    $region12: #{tpu_custom_call.1} parent=1 // pred_region
      _
    $region13: #{tpu_custom_call.1} parent=1 // pred_fallthru
      _
    // Predicated region
    $region14: #{tpu_custom_call.1} parent=1 // pred_check
      _
    $region15: #{tpu_custom_call.1} parent=1 // pred_check_branch
      %21 = sbr.rel (0) target = $region17
    $region16: #{tpu_custom_call.1} parent=1 // pred_region
      _
    $region17: #{tpu_custom_call.1} parent=1 // pred_fallthru
      _
    // Predicated region
    $region18: #{tpu_custom_call.1} parent=1 // pred_check
      _
    $region19: #{tpu_custom_call.1} parent=1 // pred_check_branch
      %23 = sbr.rel (0) target = $region21
    $region20: #{tpu_custom_call.1} parent=1 // pred_region
      _
    $region21: #{tpu_custom_call.1} parent=1 // pred_fallthru
      _
    // Predicated region
    $region22: #{tpu_custom_call.1} parent=1 // pred_check
      _
    $region23: #{tpu_custom_call.1} parent=1 // pred_check_branch
      %25 = sbr.rel (0) target = $region25
    $region24: #{tpu_custom_call.1} parent=1 // pred_region
      _
    $region25: #{tpu_custom_call.1} parent=1 // pred_fallthru
      _
    // Predicated region
    $region26: #{tpu_custom_call.1} parent=1 // pred_check
      _
    $region27: #{tpu_custom_call.1} parent=1 // pred_check_branch
      %27 = sbr.rel (0) target = $region29
    $region28: #{tpu_custom_call.1} parent=1 // pred_region
      _
    $region29: #{tpu_custom_call.1} parent=1 // pred_fallthru
      _
    // Predicated region
    $region30: #{tpu_custom_call.1} parent=1 // pred_check
      _
    $region31: #{tpu_custom_call.1} parent=1 // pred_check_branch
      %29 = sbr.rel (0) target = $region33
    $region32: #{tpu_custom_call.1} parent=1 // pred_region
      _
    $region33: #{tpu_custom_call.1} parent=1 // pred_fallthru
      _
    %v31 = vld [vmem:[%s0] sm:$0x1]
    %v32 = vld [vmem:[%s0 + $0x1] sm:$0x1]
    %v33 = vld [vmem:[%s0 + $0xb] sm:$0x1]
    %v34 = vld [vmem:[%s0 + $0x2] sm:$0x1]
    %v35 = vsub.f32 %v31, %v34
    %v36 = vld [vmem:[%s0 + $0x5] sm:$0x1]
    %v37 = vsub.f32 %v32, %v36
    %v38 = vld [vmem:[%s0 + $0x8] sm:$0x1]
    %v39 = vmul.f32 %v35, %v35
    %v40 = vmul.f32 %v37, %v37
    %v41 = vadd.f32 %v39, %v40
    %v42 = vld [vmem:[%s0 + $0x3] sm:$0x1]
    %v43 = vsub.f32 %v31, %v42
    %v44 = vld [vmem:[%s0 + $0x6] sm:$0x1]
    %v45 = vsub.f32 %v32, %v44
    %v46 = vmul.f32 %v43, %v43
    %v47 = vmul.f32 %v45, %v45
    %v48 = vadd.f32 %v46, %v47
    %vm49 = vcmp.lt.f32.partialorder %v48, %v41
    %v50 = vsel %vm49, %v43, %v35
    %v51 = vsel %vm49, %v45, %v37
    %v52 = vld [vmem:[%s0 + $0x9] sm:$0x1]
    %v53 = vsel %vm49, %v52, %v38
    %v54 = vsel %vm49, %v48, %v41
    %v55 = vld [vmem:[%s0 + $0x4] sm:$0x1]
    %v56 = vsub.f32 %v31, %v55
    %v57 = vld [vmem:[%s0 + $0x7] sm:$0x1]
    %v58 = vsub.f32 %v32, %v57
    %v59 = vmul.f32 %v56, %v56
    %v60 = vmul.f32 %v58, %v58
    %v61 = vadd.f32 %v59, %v60
    %vm62 = vcmp.lt.f32.partialorder %v61, %v54
    %v63 = vsel %vm62, %v56, %v50
    %v64 = vsel %vm62, %v58, %v51
    %v65 = vld [vmem:[%s0 + $0xa] sm:$0x1]
    %v66 = vsel %vm62, %v65, %v53
    %v67 = vsel %vm62, %v61, %v54
    %v68 = vrsqrt.pop %v67
    %v69 = vmul.f32 %v67, %v68
    %vm70 = vcmp.eq.f32.partialorder %v67, inf
    %v71 = vsel %vm70, %v67, %v69
    %vm72 = vcmp.eq.f32.partialorder %v67, 0.0
    %v73 = vand.u32 %v67, 2147483648
    %v74 = vsel %vm72, %v73, %v71
    %v75 = vmul.f32 %v66, %v33
    %v76 = vld [vmem:[%s2] sm:$0xff]
    %v77 = vld [vmem:[%s3] sm:$0xf]
    %v78 = vld [vmem:[%s3 + $0x4] sm:$0xf]
    %v79 = vld [vmem:[%s3 + $0x8] sm:$0xf]
    %v80 = vld [vmem:[%s3 + $0xc] sm:$0xf]
    %v81 = vld [vmem:[%s3 + $0x10] sm:$0xf]
    %v82 = vld [vmem:[%s3 + $0x14] sm:$0xf]
    %v83 = vld [vmem:[%s3 + $0x18] sm:$0xf]
    %v84 = vld [vmem:[%s3 + $0x1c] sm:$0xf]
    %v85 = vld [vmem:[%s3 + $0x20] sm:$0xf]
    %v86 = vld [vmem:[%s3 + $0x24] sm:$0xf]
    %v87 = vld [vmem:[%s3 + $0x28] sm:$0xf]
    %v88 = vld [vmem:[%s3 + $0x2c] sm:$0xf]
    %v89 = vld [vmem:[%s3 + $0x30] sm:$0xf]
    %v90 = vld [vmem:[%s3 + $0x34] sm:$0xf]
    %v91 = vld [vmem:[%s3 + $0x38] sm:$0xf]
    %v92 = vld [vmem:[%s3 + $0x3c] sm:$0xf]
    %v93 = vld [vmem:[%s3 + $0x40] sm:$0xf]
    %v94 = vld [vmem:[%s3 + $0x44] sm:$0xf]
    %v95 = vld [vmem:[%s3 + $0x48] sm:$0xf]
    %v96 = vld [vmem:[%s3 + $0x4c] sm:$0xf]
    %v97 = vld [vmem:[%s3 + $0x50] sm:$0xf]
    %v98 = vld [vmem:[%s3 + $0x54] sm:$0xf]
    %v99 = vld [vmem:[%s3 + $0x58] sm:$0xf]
    %v100 = vld [vmem:[%s3 + $0x5c] sm:$0xf]
    %v101 = vld [vmem:[%s3 + $0x60] sm:$0xf]
    %v102 = vld [vmem:[%s3 + $0x64] sm:$0xf]
    %v103 = vld [vmem:[%s3 + $0x68] sm:$0xf]
    %v104 = vld [vmem:[%s3 + $0x6c] sm:$0xf]
    %v105 = vld [vmem:[%s3 + $0x70] sm:$0xf]
    %v106 = vld [vmem:[%s3 + $0x74] sm:$0xf]
    %v107 = vld [vmem:[%s3 + $0x78] sm:$0xf]
    %v108 = vld [vmem:[%s3 + $0x7c] sm:$0xf]
    %v109 = vld [vmem:[%s3 + $0x80] sm:$0xf]
    %v110 = vld [vmem:[%s3 + $0x84] sm:$0xf]
    %v111 = vld [vmem:[%s3 + $0x88] sm:$0xf]
    %v112 = vld [vmem:[%s3 + $0x8c] sm:$0xf]
    %v113 = vld [vmem:[%s3 + $0x90] sm:$0xf]
    %v114 = vld [vmem:[%s3 + $0x94] sm:$0xf]
    %v115 = vld [vmem:[%s3 + $0x98] sm:$0xf]
    %v116 = vld [vmem:[%s3 + $0x9c] sm:$0xf]
    %v117 = vld [vmem:[%s3 + $0xa0] sm:$0xf]
    %v118 = vld [vmem:[%s3 + $0xa4] sm:$0xf]
    %v119 = vld [vmem:[%s3 + $0xa8] sm:$0xf]
    %v120 = vld [vmem:[%s3 + $0xac] sm:$0xf]
    %v121 = vld [vmem:[%s3 + $0xb0] sm:$0xf]
    %v122 = vld [vmem:[%s3 + $0xb4] sm:$0xf]
    %v123 = vld [vmem:[%s3 + $0xb8] sm:$0xf]
    %v124 = vld [vmem:[%s3 + $0xbc] sm:$0xf]
    %v125 = vld [vmem:[%s3 + $0xc0] sm:$0xf]
    %v126 = vld [vmem:[%s3 + $0xc4] sm:$0xf]
    %v127 = vld [vmem:[%s3 + $0xc8] sm:$0xf]
    %v128 = vld [vmem:[%s3 + $0xcc] sm:$0xf]
    %v129 = vld [vmem:[%s3 + $0xd0] sm:$0xf]
    %v130 = vld [vmem:[%s3 + $0xd4] sm:$0xf]
    %v131 = vld [vmem:[%s3 + $0xd8] sm:$0xf]
    %v132 = vld [vmem:[%s3 + $0xdc] sm:$0xf]
    %v133 = vld [vmem:[%s3 + $0xe0] sm:$0xf]
    %v134 = vld [vmem:[%s3 + $0xe4] sm:$0xf]
    %v135 = vld [vmem:[%s3 + $0xe8] sm:$0xf]
    %v136 = vld [vmem:[%s3 + $0xec] sm:$0xf]
    %v137 = vld [vmem:[%s3 + $0xf0] sm:$0xf]
    %v138 = vld [vmem:[%s3 + $0xf4] sm:$0xf]
    %v139 = vld [vmem:[%s3 + $0xf8] sm:$0xf]
    %v140 = vld [vmem:[%s3 + $0xfc] sm:$0xf]
    %v141 = vld [vmem:[%s3 + $0x100] sm:$0xf]
    %v142 = vld [vmem:[%s3 + $0x104] sm:$0xf]
    %v143 = vld [vmem:[%s3 + $0x108] sm:$0xf]
    %v144 = vld [vmem:[%s3 + $0x10c] sm:$0xf]
    %v145 = vld [vmem:[%s3 + $0x110] sm:$0xf]
    %v146 = vld [vmem:[%s3 + $0x114] sm:$0xf]
    %v147 = vld [vmem:[%s3 + $0x118] sm:$0xf]
    %v148 = vld [vmem:[%s3 + $0x11c] sm:$0xf]
    %v149 = vld [vmem:[%s3 + $0x120] sm:$0xf]
    %v150 = vld [vmem:[%s3 + $0x124] sm:$0xf]
    %v151 = vld [vmem:[%s3 + $0x128] sm:$0xf]
    %v152 = vld [vmem:[%s3 + $0x12c] sm:$0xf]
    %v153 = vld [vmem:[%s3 + $0x130] sm:$0xf]
    %v154 = vld [vmem:[%s3 + $0x134] sm:$0xf]
    %v155 = vld [vmem:[%s3 + $0x138] sm:$0xf]
    %v156 = vld [vmem:[%s3 + $0x13c] sm:$0xf]
    %v157 = vld [vmem:[%s3 + $0x140] sm:$0xf]
    %v158 = vld [vmem:[%s3 + $0x144] sm:$0xf]
    %v159 = vld [vmem:[%s3 + $0x148] sm:$0xf]
    %v160 = vld [vmem:[%s3 + $0x14c] sm:$0xf]
    %v161 = vld [vmem:[%s3 + $0x150] sm:$0xf]
    %v162 = vld [vmem:[%s3 + $0x154] sm:$0xf]
    %v163 = vld [vmem:[%s3 + $0x158] sm:$0xf]
    %v164 = vld [vmem:[%s3 + $0x15c] sm:$0xf]
    %v165 = vld [vmem:[%s3 + $0x160] sm:$0xf]
    %v166 = vld [vmem:[%s3 + $0x164] sm:$0xf]
    %v167 = vld [vmem:[%s3 + $0x168] sm:$0xf]
    %v168 = vld [vmem:[%s3 + $0x16c] sm:$0xf]
    %v169 = vld [vmem:[%s3 + $0x170] sm:$0xf]
    %v170 = vld [vmem:[%s3 + $0x174] sm:$0xf]
    %v171 = vld [vmem:[%s3 + $0x178] sm:$0xf]
    %v172 = vld [vmem:[%s3 + $0x17c] sm:$0xf]
    %v173 = vld [vmem:[%s3 + $0x180] sm:$0xf]
    %v174 = vld [vmem:[%s3 + $0x184] sm:$0xf]
    %v175 = vld [vmem:[%s3 + $0x188] sm:$0xf]
    %v176 = vld [vmem:[%s3 + $0x18c] sm:$0xf]
    %v177 = vld [vmem:[%s3 + $0x190] sm:$0xf]
    %v178 = vld [vmem:[%s3 + $0x194] sm:$0xf]
    %v179 = vld [vmem:[%s3 + $0x198] sm:$0xf]
    %v180 = vld [vmem:[%s3 + $0x19c] sm:$0xf]
    %v181 = vld [vmem:[%s3 + $0x1a0] sm:$0xf]
    %v182 = vld [vmem:[%s3 + $0x1a4] sm:$0xf]
    %v183 = vld [vmem:[%s3 + $0x1a8] sm:$0xf]
    %v184 = vld [vmem:[%s3 + $0x1ac] sm:$0xf]
    %v185 = vld [vmem:[%s3 + $0x1b0] sm:$0xf]
    %v186 = vld [vmem:[%s3 + $0x1b4] sm:$0xf]
    %v187 = vld [vmem:[%s3 + $0x1b8] sm:$0xf]
    %v188 = vld [vmem:[%s3 + $0x1bc] sm:$0xf]
    %v189 = vld [vmem:[%s3 + $0x1c0] sm:$0xf]
    %v190 = vld [vmem:[%s3 + $0x1c4] sm:$0xf]
    %v191 = vld [vmem:[%s3 + $0x1c8] sm:$0xf]
    %v192 = vld [vmem:[%s3 + $0x1cc] sm:$0xf]
    %v193 = vld [vmem:[%s3 + $0x1d0] sm:$0xf]
    %v194 = vld [vmem:[%s3 + $0x1d4] sm:$0xf]
    %v195 = vld [vmem:[%s3 + $0x1d8] sm:$0xf]
    %v196 = vld [vmem:[%s3 + $0x1dc] sm:$0xf]
    %v197 = vld [vmem:[%s3 + $0x1e0] sm:$0xf]
    %v198 = vld [vmem:[%s3 + $0x1e4] sm:$0xf]
    %v199 = vld [vmem:[%s3 + $0x1e8] sm:$0xf]
    %v200 = vld [vmem:[%s3 + $0x1ec] sm:$0xf]
    %v201 = vld [vmem:[%s3 + $0x1f0] sm:$0xf]
    %v202 = vld [vmem:[%s3 + $0x1f4] sm:$0xf]
    %v203 = vld [vmem:[%s3 + $0x1f8] sm:$0xf]
    %v204 = vld [vmem:[%s3 + $0x1fc] sm:$0xf]
    %v206 = vcombine.high %v76, %v76
    %v208 = vunpack.c.l.s4 1966171168
    %v209 = vunpack.c.0.s8 %v208
    %v210 = vlaneseq
    %v211 = vshrl.u32 %v210, 7
    %v212 = vsub.s32 %v209, %v211
    %v213 = vrot.slane %v76, %v212
    %v215 = vunpack.c.l.s4 1966171168
    %v216 = vunpack.c.0.s8 %v215
    %v217 = vlaneseq
    %v218 = vshrl.u32 %v217, 7
    %v219 = vsub.s32 %v216, %v218
    %v220 = vrot.slane %v206, %v219
    %v221 = vcombine.high %v213, %v213
    %v222 = vcombine.high %v220, %v220
    %v224 = vunpack.c.l.s4 1966171168
    %v225 = vunpack.c.0.s8 %v224
    %v226 = vlaneseq
    %v227 = vshrl.u32 %v226, 7
    %v228 = vsub.s32 %v225, %v227
    %v229 = vrot.slane %v213, %v228
    %v231 = vunpack.c.l.s4 1966171168
    %v232 = vunpack.c.0.s8 %v231
    %v233 = vlaneseq
    %v234 = vshrl.u32 %v233, 7
    %v235 = vsub.s32 %v232, %v234
    %v236 = vrot.slane %v220, %v235
    %v238 = vunpack.c.l.s4 1966171168
    %v239 = vunpack.c.0.s8 %v238
    %v240 = vlaneseq
    %v241 = vshrl.u32 %v240, 7
    %v242 = vsub.s32 %v239, %v241
    %v243 = vrot.slane %v221, %v242
    %v245 = vunpack.c.l.s4 1966171168
    %v246 = vunpack.c.0.s8 %v245
    %v247 = vlaneseq
    %v248 = vshrl.u32 %v247, 7
    %v249 = vsub.s32 %v246, %v248
    %v250 = vrot.slane %v222, %v249
    %v251 = vcombine.high %v229, %v229
    %v252 = vcombine.high %v236, %v236
    %v253 = vcombine.high %v243, %v243
    %v254 = vcombine.high %v250, %v250
    %v391 = vunpack.c.l.b16 %v77
    %v392 = vunpack.c.l.b16 %v78
    %v393 = vunpack.c.l.b16 %v79
    %v394 = vunpack.c.l.b16 %v80
    %v395 = vunpack.c.l.b16 %v81
    %v396 = vunpack.c.l.b16 %v82
    %v397 = vunpack.c.l.b16 %v83
    %v398 = vunpack.c.l.b16 %v84
    %v399 = vunpack.c.l.b16 %v85
    %v400 = vunpack.c.l.b16 %v86
    %v401 = vunpack.c.l.b16 %v87
    %v402 = vunpack.c.l.b16 %v88
    %v403 = vunpack.c.l.b16 %v89
    %v404 = vunpack.c.l.b16 %v90
    %v405 = vunpack.c.l.b16 %v91
    %v406 = vunpack.c.l.b16 %v92
    %v407 = vunpack.c.l.b16 %v93
    %v408 = vunpack.c.l.b16 %v94
    %v409 = vunpack.c.l.b16 %v95
    %v410 = vunpack.c.l.b16 %v96
    %v411 = vunpack.c.l.b16 %v97
    %v412 = vunpack.c.l.b16 %v98
    %v413 = vunpack.c.l.b16 %v99
    %v414 = vunpack.c.l.b16 %v100
    %v415 = vunpack.c.l.b16 %v101
    %v416 = vunpack.c.l.b16 %v102
    %v417 = vunpack.c.l.b16 %v103
    %v418 = vunpack.c.l.b16 %v104
    %v419 = vunpack.c.l.b16 %v105
    %v420 = vunpack.c.l.b16 %v106
    %v421 = vunpack.c.l.b16 %v107
    %v422 = vunpack.c.l.b16 %v108
    %v423 = vunpack.c.l.b16 %v109
    %v424 = vunpack.c.l.b16 %v110
    %v425 = vunpack.c.l.b16 %v111
    %v426 = vunpack.c.l.b16 %v112
    %v427 = vunpack.c.l.b16 %v113
    %v428 = vunpack.c.l.b16 %v114
    %v429 = vunpack.c.l.b16 %v115
    %v430 = vunpack.c.l.b16 %v116
    %v431 = vunpack.c.l.b16 %v117
    %v432 = vunpack.c.l.b16 %v118
    %v433 = vunpack.c.l.b16 %v119
    %v434 = vunpack.c.l.b16 %v120
    %v435 = vunpack.c.l.b16 %v121
    %v436 = vunpack.c.l.b16 %v122
    %v437 = vunpack.c.l.b16 %v123
    %v438 = vunpack.c.l.b16 %v124
    %v439 = vunpack.c.l.b16 %v125
    %v440 = vunpack.c.l.b16 %v126
    %v441 = vunpack.c.l.b16 %v127
    %v442 = vunpack.c.l.b16 %v128
    %v443 = vunpack.c.l.b16 %v129
    %v444 = vunpack.c.l.b16 %v130
    %v445 = vunpack.c.l.b16 %v131
    %v446 = vunpack.c.l.b16 %v132
    %v447 = vunpack.c.l.b16 %v133
    %v448 = vunpack.c.l.b16 %v134
    %v449 = vunpack.c.l.b16 %v135
    %v450 = vunpack.c.l.b16 %v136
    %v451 = vunpack.c.l.b16 %v137
    %v452 = vunpack.c.l.b16 %v138
    %v453 = vunpack.c.l.b16 %v139
    %v454 = vunpack.c.l.b16 %v140
    %v455 = vunpack.c.l.b16 %v141
    %v456 = vunpack.c.l.b16 %v142
    %v457 = vunpack.c.l.b16 %v143
    %v458 = vunpack.c.l.b16 %v144
    %v459 = vunpack.c.l.b16 %v145
    %v460 = vunpack.c.l.b16 %v146
    %v461 = vunpack.c.l.b16 %v147
    %v462 = vunpack.c.l.b16 %v148
    %v463 = vunpack.c.l.b16 %v149
    %v464 = vunpack.c.l.b16 %v150
    %v465 = vunpack.c.l.b16 %v151
    %v466 = vunpack.c.l.b16 %v152
    %v467 = vunpack.c.l.b16 %v153
    %v468 = vunpack.c.l.b16 %v154
    %v469 = vunpack.c.l.b16 %v155
    %v470 = vunpack.c.l.b16 %v156
    %v471 = vunpack.c.l.b16 %v157
    %v472 = vunpack.c.l.b16 %v158
    %v473 = vunpack.c.l.b16 %v159
    %v474 = vunpack.c.l.b16 %v160
    %v475 = vunpack.c.l.b16 %v161
    %v476 = vunpack.c.l.b16 %v162
    %v477 = vunpack.c.l.b16 %v163
    %v478 = vunpack.c.l.b16 %v164
    %v479 = vunpack.c.l.b16 %v165
    %v480 = vunpack.c.l.b16 %v166
    %v481 = vunpack.c.l.b16 %v167
    %v482 = vunpack.c.l.b16 %v168
    %v483 = vunpack.c.l.b16 %v169
    %v484 = vunpack.c.l.b16 %v170
    %v485 = vunpack.c.l.b16 %v171
    %v486 = vunpack.c.l.b16 %v172
    %v487 = vunpack.c.l.b16 %v173
    %v488 = vunpack.c.l.b16 %v174
    %v489 = vunpack.c.l.b16 %v175
    %v490 = vunpack.c.l.b16 %v176
    %v491 = vunpack.c.l.b16 %v177
    %v492 = vunpack.c.l.b16 %v178
    %v493 = vunpack.c.l.b16 %v179
    %v494 = vunpack.c.l.b16 %v180
    %v495 = vunpack.c.l.b16 %v181
    %v496 = vunpack.c.l.b16 %v182
    %v497 = vunpack.c.l.b16 %v183
    %v498 = vunpack.c.l.b16 %v184
    %v499 = vunpack.c.l.b16 %v185
    %v500 = vunpack.c.l.b16 %v186
    %v501 = vunpack.c.l.b16 %v187
    %v502 = vunpack.c.l.b16 %v188
    %v503 = vunpack.c.l.b16 %v189
    %v504 = vunpack.c.l.b16 %v190
    %v505 = vunpack.c.l.b16 %v191
    %v506 = vunpack.c.l.b16 %v192
    %v507 = vunpack.c.l.b16 %v193
    %v508 = vunpack.c.l.b16 %v194
    %v509 = vunpack.c.l.b16 %v195
    %v510 = vunpack.c.l.b16 %v196
    %v511 = vunpack.c.l.b16 %v197
    %v512 = vunpack.c.l.b16 %v198
    %v513 = vunpack.c.l.b16 %v199
    %v514 = vunpack.c.l.b16 %v200
    %v515 = vunpack.c.l.b16 %v201
    %v516 = vunpack.c.l.b16 %v202
    %v517 = vunpack.c.l.b16 %v203
    %v518 = vunpack.c.l.b16 %v204
    %v519 = vpack.c.b16 %v392, %v391
    %v520 = vpack.c.b16 %v394, %v393
    %v521 = vpack.c.b16 %v396, %v395
    %v522 = vpack.c.b16 %v398, %v397
    %v523 = vpack.c.b16 %v400, %v399
    %v524 = vpack.c.b16 %v402, %v401
    %v525 = vpack.c.b16 %v404, %v403
    %v526 = vpack.c.b16 %v406, %v405
    %v527 = vpack.c.b16 %v408, %v407
    %v528 = vpack.c.b16 %v410, %v409
    %v529 = vpack.c.b16 %v412, %v411
    %v530 = vpack.c.b16 %v414, %v413
    %v531 = vpack.c.b16 %v416, %v415
    %v532 = vpack.c.b16 %v418, %v417
    %v533 = vpack.c.b16 %v420, %v419
    %v534 = vpack.c.b16 %v422, %v421
    %v535 = vpack.c.b16 %v424, %v423
    %v536 = vpack.c.b16 %v426, %v425
    %v537 = vpack.c.b16 %v428, %v427
    %v538 = vpack.c.b16 %v430, %v429
    %v539 = vpack.c.b16 %v432, %v431
    %v540 = vpack.c.b16 %v434, %v433
    %v541 = vpack.c.b16 %v436, %v435
    %v542 = vpack.c.b16 %v438, %v437
    %v543 = vpack.c.b16 %v440, %v439
    %v544 = vpack.c.b16 %v442, %v441
    %v545 = vpack.c.b16 %v444, %v443
    %v546 = vpack.c.b16 %v446, %v445
    %v547 = vpack.c.b16 %v448, %v447
    %v548 = vpack.c.b16 %v450, %v449
    %v549 = vpack.c.b16 %v452, %v451
    %v550 = vpack.c.b16 %v454, %v453
    %v551 = vpack.c.b16 %v456, %v455
    %v552 = vpack.c.b16 %v458, %v457
    %v553 = vpack.c.b16 %v460, %v459
    %v554 = vpack.c.b16 %v462, %v461
    %v555 = vpack.c.b16 %v464, %v463
    %v556 = vpack.c.b16 %v466, %v465
    %v557 = vpack.c.b16 %v468, %v467
    %v558 = vpack.c.b16 %v470, %v469
    %v559 = vpack.c.b16 %v472, %v471
    %v560 = vpack.c.b16 %v474, %v473
    %v561 = vpack.c.b16 %v476, %v475
    %v562 = vpack.c.b16 %v478, %v477
    %v563 = vpack.c.b16 %v480, %v479
    %v564 = vpack.c.b16 %v482, %v481
    %v565 = vpack.c.b16 %v484, %v483
    %v566 = vpack.c.b16 %v486, %v485
    %v567 = vpack.c.b16 %v488, %v487
    %v568 = vpack.c.b16 %v490, %v489
    %v569 = vpack.c.b16 %v492, %v491
    %v570 = vpack.c.b16 %v494, %v493
    %v571 = vpack.c.b16 %v496, %v495
    %v572 = vpack.c.b16 %v498, %v497
    %v573 = vpack.c.b16 %v500, %v499
    %v574 = vpack.c.b16 %v502, %v501
    %v575 = vpack.c.b16 %v504, %v503
    %v576 = vpack.c.b16 %v506, %v505
    %v577 = vpack.c.b16 %v508, %v507
    %v578 = vpack.c.b16 %v510, %v509
    %v579 = vpack.c.b16 %v512, %v511
    %v580 = vpack.c.b16 %v514, %v513
    %v581 = vpack.c.b16 %v516, %v515
    %v582 = vpack.c.b16 %v518, %v517
    %647 = vmatprep.subr.bf16.mxu0 0
    %648 = vmatpush1.bf16.msra.mxu0 %v526
    %649 = vmatprep.subr.bf16.mxu0 0
    %650 = vmatpush1.bf16.msra.mxu0 %v525
    %651 = vmatprep.subr.bf16.mxu0 0
    %652 = vmatpush1.bf16.msra.mxu0 %v524
    %653 = vmatprep.subr.bf16.mxu0 0
    %654 = vmatpush1.bf16.msra.mxu0 %v523
    %655 = vmatprep.subr.bf16.mxu0 0
    %656 = vmatpush1.bf16.msra.mxu0 %v522
    %657 = vmatprep.subr.bf16.mxu0 0
    %658 = vmatpush1.bf16.msra.mxu0 %v521
    %659 = vmatprep.subr.bf16.mxu0 0
    %660 = vmatpush1.bf16.msra.mxu0 %v520
    %661 = vmatprep.subr.bf16.mxu0 0
    %662 = vmatpush1.bf16.msra.mxu0 %v519
    %663 = vmatprep.subr.bf16.mxu0 0
    %664 = vmatpush2.bf16.msra.mxu0 %v534
    %665 = vmatprep.subr.bf16.mxu0 0
    %666 = vmatpush2.bf16.msra.mxu0 %v533
    %667 = vmatprep.subr.bf16.mxu0 0
    %668 = vmatpush2.bf16.msra.mxu0 %v532
    %669 = vmatprep.subr.bf16.mxu0 0
    %670 = vmatpush2.bf16.msra.mxu0 %v531
    %671 = vmatprep.subr.bf16.mxu0 0
    %672 = vmatpush2.bf16.msra.mxu0 %v530
    %673 = vmatprep.subr.bf16.mxu0 0
    %674 = vmatpush2.bf16.msra.mxu0 %v529
    %675 = vmatprep.subr.bf16.mxu0 0
    %676 = vmatpush2.bf16.msra.mxu0 %v528
    %677 = vmatprep.subr.bf16.mxu0 0
    %678 = vmatpush2.bf16.msra.mxu0 %v527
    %679 = vmatprep.mubr.bf16.mxu0 %v243
    %680 = vmatmul.mubr.bf16.gmra.mxu0 %v229
    %v681 = vpop.f32.mrf.mxu0
    %v682 = vadd.f32 0.0, %v681
    %v683 = vpop.f32.mrf.mxu0
    %v684 = vpop.f32.mrf.mxu0
    %v685 = vpop.f32.mrf.mxu0
    %686 = vdwg.mxu0
    %687 = vmatprep.subr.bf16.mxu0 0
    %688 = vmatpush1.bf16.msra.mxu0 %v542
    %689 = vmatprep.subr.bf16.mxu0 0
    %690 = vmatpush1.bf16.msra.mxu0 %v541
    %691 = vmatprep.subr.bf16.mxu0 0
    %692 = vmatpush1.bf16.msra.mxu0 %v540
    %693 = vmatprep.subr.bf16.mxu0 0
    %694 = vmatpush1.bf16.msra.mxu0 %v539
    %695 = vmatprep.subr.bf16.mxu0 0
    %696 = vmatpush1.bf16.msra.mxu0 %v538
    %697 = vmatprep.subr.bf16.mxu0 0
    %698 = vmatpush1.bf16.msra.mxu0 %v537
    %699 = vmatprep.subr.bf16.mxu0 0
    %700 = vmatpush1.bf16.msra.mxu0 %v536
    %701 = vmatprep.subr.bf16.mxu0 0
    %702 = vmatpush1.bf16.msra.mxu0 %v535
    %703 = vmatprep.subr.bf16.mxu0 0
    %704 = vmatpush2.bf16.msra.mxu0 %v550
    %705 = vmatprep.subr.bf16.mxu0 0
    %706 = vmatpush2.bf16.msra.mxu0 %v549
    %707 = vmatprep.subr.bf16.mxu0 0
    %708 = vmatpush2.bf16.msra.mxu0 %v548
    %709 = vmatprep.subr.bf16.mxu0 0
    %710 = vmatpush2.bf16.msra.mxu0 %v547
    %711 = vmatprep.subr.bf16.mxu0 0
    %712 = vmatpush2.bf16.msra.mxu0 %v546
    %713 = vmatprep.subr.bf16.mxu0 0
    %714 = vmatpush2.bf16.msra.mxu0 %v545
    %715 = vmatprep.subr.bf16.mxu0 0
    %716 = vmatpush2.bf16.msra.mxu0 %v544
    %717 = vmatprep.subr.bf16.mxu0 0
    %718 = vmatpush2.bf16.msra.mxu0 %v543
    %719 = vmatprep.mubr.bf16.mxu0 %v253
    %720 = vmatmul.mubr.bf16.gmra.mxu0 %v251
    %v721 = vpop.f32.mrf.mxu0
    %v722 = vadd.f32 %v682, %v721
    %v723 = vpop.f32.mrf.mxu0
    %v724 = vpop.f32.mrf.mxu0
    %v725 = vpop.f32.mrf.mxu0
    %726 = vdwg.mxu0
    %727 = vmatprep.subr.bf16.mxu0 0
    %728 = vmatpush1.bf16.msra.mxu0 %v558
    %729 = vmatprep.subr.bf16.mxu0 0
    %730 = vmatpush1.bf16.msra.mxu0 %v557
    %731 = vmatprep.subr.bf16.mxu0 0
    %732 = vmatpush1.bf16.msra.mxu0 %v556
    %733 = vmatprep.subr.bf16.mxu0 0
    %734 = vmatpush1.bf16.msra.mxu0 %v555
    %735 = vmatprep.subr.bf16.mxu0 0
    %736 = vmatpush1.bf16.msra.mxu0 %v554
    %737 = vmatprep.subr.bf16.mxu0 0
    %738 = vmatpush1.bf16.msra.mxu0 %v553
    %739 = vmatprep.subr.bf16.mxu0 0
    %740 = vmatpush1.bf16.msra.mxu0 %v552
    %741 = vmatprep.subr.bf16.mxu0 0
    %742 = vmatpush1.bf16.msra.mxu0 %v551
    %743 = vmatprep.subr.bf16.mxu0 0
    %744 = vmatpush2.bf16.msra.mxu0 %v566
    %745 = vmatprep.subr.bf16.mxu0 0
    %746 = vmatpush2.bf16.msra.mxu0 %v565
    %747 = vmatprep.subr.bf16.mxu0 0
    %748 = vmatpush2.bf16.msra.mxu0 %v564
    %749 = vmatprep.subr.bf16.mxu0 0
    %750 = vmatpush2.bf16.msra.mxu0 %v563
    %751 = vmatprep.subr.bf16.mxu0 0
    %752 = vmatpush2.bf16.msra.mxu0 %v562
    %753 = vmatprep.subr.bf16.mxu0 0
    %754 = vmatpush2.bf16.msra.mxu0 %v561
    %755 = vmatprep.subr.bf16.mxu0 0
    %756 = vmatpush2.bf16.msra.mxu0 %v560
    %757 = vmatprep.subr.bf16.mxu0 0
    %758 = vmatpush2.bf16.msra.mxu0 %v559
    %759 = vmatprep.mubr.bf16.mxu0 %v250
    %760 = vmatmul.mubr.bf16.gmra.mxu0 %v236
    %v761 = vpop.f32.mrf.mxu0
    %v762 = vadd.f32 %v722, %v761
    %v763 = vpop.f32.mrf.mxu0
    %v764 = vpop.f32.mrf.mxu0
    %v765 = vpop.f32.mrf.mxu0
    %766 = vdwg.mxu0
    %767 = vmatprep.subr.bf16.mxu0 0
    %768 = vmatpush1.bf16.msra.mxu0 %v574
    %769 = vmatprep.subr.bf16.mxu0 0
    %770 = vmatpush1.bf16.msra.mxu0 %v573
    %771 = vmatprep.subr.bf16.mxu0 0
    %772 = vmatpush1.bf16.msra.mxu0 %v572
    %773 = vmatprep.subr.bf16.mxu0 0
    %774 = vmatpush1.bf16.msra.mxu0 %v571
    %775 = vmatprep.subr.bf16.mxu0 0
    %776 = vmatpush1.bf16.msra.mxu0 %v570
    %777 = vmatprep.subr.bf16.mxu0 0
    %778 = vmatpush1.bf16.msra.mxu0 %v569
    %779 = vmatprep.subr.bf16.mxu0 0
    %780 = vmatpush1.bf16.msra.mxu0 %v568
    %781 = vmatprep.subr.bf16.mxu0 0
    %782 = vmatpush1.bf16.msra.mxu0 %v567
    %783 = vmatprep.subr.bf16.mxu0 0
    %784 = vmatpush2.bf16.msra.mxu0 %v582
    %785 = vmatprep.subr.bf16.mxu0 0
    %786 = vmatpush2.bf16.msra.mxu0 %v581
    %787 = vmatprep.subr.bf16.mxu0 0
    %788 = vmatpush2.bf16.msra.mxu0 %v580
    %789 = vmatprep.subr.bf16.mxu0 0
    %790 = vmatpush2.bf16.msra.mxu0 %v579
    %791 = vmatprep.subr.bf16.mxu0 0
    %792 = vmatpush2.bf16.msra.mxu0 %v578
    %793 = vmatprep.subr.bf16.mxu0 0
    %794 = vmatpush2.bf16.msra.mxu0 %v577
    %795 = vmatprep.subr.bf16.mxu0 0
    %796 = vmatpush2.bf16.msra.mxu0 %v576
    %797 = vmatprep.subr.bf16.mxu0 0
    %798 = vmatpush2.bf16.msra.mxu0 %v575
    %799 = vmatprep.mubr.bf16.mxu0 %v254
    %800 = vmatmul.mubr.bf16.gmra.mxu0 %v252
    %v801 = vpop.f32.mrf.mxu0
    %v802 = vadd.f32 %v762, %v801
    %v803 = vpop.f32.mrf.mxu0
    %v804 = vpop.f32.mrf.mxu0
    %v805 = vpop.f32.mrf.mxu0
    %806 = vdwg.mxu0
    %v807 = vmul.f32 %v63, %v75
    %v808 = vmul.f32 %v64, %v75
    %v809 = vmul.f32 %v63, %v63
    %v810 = vmul.f32 %v809, %v75
    %v811 = vmul.f32 %v64, %v64
    %v812 = vmul.f32 %v811, %v75
    %v813 = vmul.f32 %v63, %v64
    %v814 = vmul.f32 %v813, %v75
    %v816 = vrot.slane %v808, 7
    %v819 = vrot.slane %v810, 6
    %v822 = vrot.slane %v812, 5
    %v825 = vrot.slane %v814, 4
    %v828 = vrot.slane %v74, 3
    %v831 = vrot.slane %v66, 2
    %v834 = vrot.slane %v33, 1
    %vm836 = vcmask 1040384
    %v837 = vsel %vm836, %v807, %v816
    %vm838 = vcmask 1041408
    %v839 = vsel %vm838, %v837, %v819
    %vm840 = vcmask 1042432
    %v841 = vsel %vm840, %v839, %v822
    %vm842 = vcmask 1043456
    %v843 = vsel %vm842, %v841, %v825
    %vm844 = vcmask 1044480
    %v845 = vsel %vm844, %v843, %v828
    %vm846 = vcmask 1045504
    %v847 = vsel %vm846, %v845, %v831
    %vm848 = vcmask 1046528
    %v849 = vsel %vm848, %v847, %v834
    %v850 = vpack.c.bf16 %v802, %v849
    %v851 = vld [vmem:[%s5] sm:$0x7]
    %v852 = vld [vmem:[%s1] sm:$0xf]
    %v853 = vld [vmem:[%s6] sm:$0x7]
    %vm854 = vcmask 80896
    %v856 = vsel %vm854, %v853, 0
    %v859 = vsel %vm844, %v850, 0
    %861 = vmatprep.subr.bf16.mxu0 0
    %862 = vmatpush1.bf16.msra.mxu0 0
    %863 = vmatprep.subr.bf16.mxu0 0
    %864 = vmatpush1.bf16.msra.mxu0 0
    %865 = vmatprep.subr.bf16.mxu0 0
    %866 = vmatpush1.bf16.msra.mxu0 0
    %867 = vmatprep.subr.bf16.mxu0 0
    %868 = vmatpush1.bf16.msra.mxu0 0
    %869 = vmatprep.subr.bf16.mxu0 0
    %870 = vmatpush1.bf16.msra.mxu0 0
    %871 = vmatprep.subr.bf16.mxu0 0
    %872 = vmatpush1.bf16.msra.mxu0 0
    %873 = vmatprep.subr.bf16.mxu0 0
    %874 = vmatpush1.bf16.msra.mxu0 0
    %875 = vmatprep.subr.bf16.mxu0 0
    %876 = vmatpush1.bf16.msra.mxu0 %v859
    %877 = vmatprep.subr.bf16.mxu0 0
    %878 = vmatpush2.bf16.msra.mxu0 0
    %879 = vmatprep.subr.bf16.mxu0 0
    %880 = vmatpush2.bf16.msra.mxu0 0
    %881 = vmatprep.subr.bf16.mxu0 0
    %882 = vmatpush2.bf16.msra.mxu0 0
    %883 = vmatprep.subr.bf16.mxu0 0
    %884 = vmatpush2.bf16.msra.mxu0 0
    %885 = vmatprep.subr.bf16.mxu0 0
    %886 = vmatpush2.bf16.msra.mxu0 0
    %887 = vmatprep.subr.bf16.mxu0 0
    %888 = vmatpush2.bf16.msra.mxu0 0
    %889 = vmatprep.subr.bf16.mxu0 0
    %890 = vmatpush2.bf16.msra.mxu0 0
    %891 = vmatprep.subr.bf16.mxu0 0
    %892 = vmatpush2.bf16.msra.mxu0 0
    %893 = vmatprep.mubr.bf16.mxu0 0
    %894 = vmatmul.mubr.bf16.gmra.mxu0 %v856
    %v895 = vpop.f32.mrf.mxu0
    %v896 = vadd.f32 0.0, %v895
    %v897 = vpop.f32.mrf.mxu0
    %v898 = vpop.f32.mrf.mxu0
    %v899 = vpop.f32.mrf.mxu0
    %900 = vdwg.mxu0
    %vm901 = vcmask 64512
    %v903 = vsel %vm901, %v851, 0
    %v906 = vsel %vm842, %v852, 0
    %908 = vmatprep.subr.bf16.mxu0 0
    %909 = vmatpush1.bf16.msra.mxu0 0
    %910 = vmatprep.subr.bf16.mxu0 0
    %911 = vmatpush1.bf16.msra.mxu0 0
    %912 = vmatprep.subr.bf16.mxu0 0
    %913 = vmatpush1.bf16.msra.mxu0 0
    %914 = vmatprep.subr.bf16.mxu0 0
    %915 = vmatpush1.bf16.msra.mxu0 0
    %916 = vmatprep.subr.bf16.mxu0 0
    %917 = vmatpush1.bf16.msra.mxu0 0
    %918 = vmatprep.subr.bf16.mxu0 0
    %919 = vmatpush1.bf16.msra.mxu0 0
    %920 = vmatprep.subr.bf16.mxu0 0
    %921 = vmatpush1.bf16.msra.mxu0 0
    %922 = vmatprep.subr.bf16.mxu0 0
    %923 = vmatpush1.bf16.msra.mxu0 %v906
    %924 = vmatprep.subr.bf16.mxu0 0
    %925 = vmatpush2.bf16.msra.mxu0 0
    %926 = vmatprep.subr.bf16.mxu0 0
    %927 = vmatpush2.bf16.msra.mxu0 0
    %928 = vmatprep.subr.bf16.mxu0 0
    %929 = vmatpush2.bf16.msra.mxu0 0
    %930 = vmatprep.subr.bf16.mxu0 0
    %931 = vmatpush2.bf16.msra.mxu0 0
    %932 = vmatprep.subr.bf16.mxu0 0
    %933 = vmatpush2.bf16.msra.mxu0 0
    %934 = vmatprep.subr.bf16.mxu0 0
    %935 = vmatpush2.bf16.msra.mxu0 0
    %936 = vmatprep.subr.bf16.mxu0 0
    %937 = vmatpush2.bf16.msra.mxu0 0
    %938 = vmatprep.subr.bf16.mxu0 0
    %939 = vmatpush2.bf16.msra.mxu0 0
    %940 = vmatprep.mubr.bf16.mxu0 0
    %941 = vmatmul.mubr.bf16.gmra.mxu0 %v903
    %v942 = vpop.f32.mrf.mxu0
    %v943 = vadd.f32 %v896, %v942
    %v944 = vpop.f32.mrf.mxu0
    %v945 = vpop.f32.mrf.mxu0
    %v946 = vpop.f32.mrf.mxu0
    %947 = vdwg.mxu0
    %v948 = vld [vmem:[%s7] sm:$0x3f]
    %950 = vset.pattern.permute.xlu0 0
    %951 = vperm.xlu0 %950, %v948
    %v952 = vpop.permute.xlu0 %951
    %v954 = vadd.f32 %v943, %v952
    %v955 = vmax.f32 %v954, 0.0
    %v956 = vpack.c.bf16 %v955, %v955
    %v957 = vld [vmem:[%s4] sm:$0xff]
    %v958 = vld [vmem:[%s4 + $0x8] sm:$0xff]
    %v959 = vld [vmem:[%s4 + $0x10] sm:$0xff]
    %v960 = vld [vmem:[%s4 + $0x18] sm:$0xff]
    %v961 = vld [vmem:[%s4 + $0x20] sm:$0xff]
    %v962 = vld [vmem:[%s4 + $0x28] sm:$0xff]
    %v963 = vld [vmem:[%s4 + $0x30] sm:$0xff]
    %v964 = vld [vmem:[%s4 + $0x38] sm:$0xff]
    %v973 = vunpack.c.l.b16 %v957
    %v974 = vunpack.c.h.b16 %v957
    %v975 = vunpack.c.l.b16 %v958
    %v976 = vunpack.c.h.b16 %v958
    %v977 = vunpack.c.l.b16 %v959
    %v978 = vunpack.c.h.b16 %v959
    %v979 = vunpack.c.l.b16 %v960
    %v980 = vunpack.c.h.b16 %v960
    %v981 = vunpack.c.l.b16 %v961
    %v982 = vunpack.c.h.b16 %v961
    %v983 = vunpack.c.l.b16 %v962
    %v984 = vunpack.c.h.b16 %v962
    %v985 = vunpack.c.l.b16 %v963
    %v986 = vunpack.c.h.b16 %v963
    %v987 = vunpack.c.l.b16 %v964
    %v988 = vunpack.c.h.b16 %v964
    %v989 = vpack.c.b16 %v975, %v973
    %v990 = vpack.c.b16 %v976, %v974
    %v991 = vpack.c.b16 %v979, %v977
    %v992 = vpack.c.b16 %v980, %v978
    %v993 = vpack.c.b16 %v983, %v981
    %v994 = vpack.c.b16 %v984, %v982
    %v995 = vpack.c.b16 %v987, %v985
    %v996 = vpack.c.b16 %v988, %v986
    %vm1005 = vcmask 523264
    %v1007 = vsel %vm1005, %v956, 0
    %1009 = vmatprep.subr.bf16.mxu0 0
    %1010 = vmatpush1.bf16.msra.mxu0 0
    %1011 = vmatprep.subr.bf16.mxu0 0
    %1012 = vmatpush1.bf16.msra.mxu0 0
    %1013 = vmatprep.subr.bf16.mxu0 0
    %1014 = vmatpush1.bf16.msra.mxu0 0
    %1015 = vmatprep.subr.bf16.mxu0 0
    %1016 = vmatpush1.bf16.msra.mxu0 0
    %1017 = vmatprep.subr.bf16.mxu0 %v996
    %1018 = vmatpush1.bf16.msra.mxu0 %v995
    %1019 = vmatprep.subr.bf16.mxu0 %v994
    %1020 = vmatpush1.bf16.msra.mxu0 %v993
    %1021 = vmatprep.subr.bf16.mxu0 %v992
    %1022 = vmatpush1.bf16.msra.mxu0 %v991
    %1023 = vmatprep.subr.bf16.mxu0 %v990
    %1024 = vmatpush1.bf16.msra.mxu0 %v989
    %1025 = vmatprep.subr.bf16.mxu0 0
    %1026 = vmatpush2.bf16.msra.mxu0 0
    %1027 = vmatprep.subr.bf16.mxu0 0
    %1028 = vmatpush2.bf16.msra.mxu0 0
    %1029 = vmatprep.subr.bf16.mxu0 0
    %1030 = vmatpush2.bf16.msra.mxu0 0
    %1031 = vmatprep.subr.bf16.mxu0 0
    %1032 = vmatpush2.bf16.msra.mxu0 0
    %1033 = vmatprep.subr.bf16.mxu0 0
    %1034 = vmatpush2.bf16.msra.mxu0 0
    %1035 = vmatprep.subr.bf16.mxu0 0
    %1036 = vmatpush2.bf16.msra.mxu0 0
    %1037 = vmatprep.subr.bf16.mxu0 0
    %1038 = vmatpush2.bf16.msra.mxu0 0
    %1039 = vmatprep.subr.bf16.mxu0 0
    %1040 = vmatpush2.bf16.msra.mxu0 0
    %1041 = vmatprep.mubr.bf16.mxu0 0
    %1042 = vmatmul.mubr.bf16.gmra.mxu0 %v1007
    %v1043 = vpop.f32.mrf.mxu0
    %v1044 = vadd.f32 0.0, %v1043
    %v1045 = vpop.f32.mrf.mxu0
    %v1046 = vadd.f32 0.0, %v1045
    %v1047 = vpop.f32.mrf.mxu0
    %v1048 = vpop.f32.mrf.mxu0
    %1049 = vdwg.mxu0
    %v1050 = vpack.c.bf16 %v1044, %v1044
    %v1051 = vpack.c.bf16 %v1046, %v1046
    %v1054 = vunpack.c.l.b16 %v1050
    %v1055 = vunpack.c.l.b16 %v1051
    %v1056 = vpack.c.b16 %v1055, %v1054
    %1058 = vst [vmem:[#allocation2] sm:$0x77] %v1056
    // Predicated region
    $region34: #{tpu_custom_call.1} parent=1 // pred_check
      _
    $region35: #{tpu_custom_call.1} parent=1 // pred_check_branch
      %1060 = sbr.rel (0) target = $region37
    $region36: #{tpu_custom_call.1} parent=1 // pred_region
      %s1062 = ssub.s32 128, 128
      %1063 = vsyncadd [#allocation3], %s1062
      %s1065 = sshll.u32 [#allocation2], 4
      %s1066 = int_to_ptr.vmem [resolvable:$true] %s1065
      %1068 = dma.vmem_to_hbm [thread:$0]  %s1066, 128, %s8, [#allocation3]
    $region37: #{tpu_custom_call.1} parent=1 // pred_fallthru
      _
    // Predicated region
    $region38: #{tpu_custom_call.1} parent=1 // pred_check
      _
    $region39: #{tpu_custom_call.1} parent=1 // pred_check_branch
      %1070 = sbr.rel (0) target = $region41
    $region40: #{tpu_custom_call.1} parent=1 // pred_region
      %1071 = dma.done [#allocation3], 128
    $region41: #{tpu_custom_call.1} parent=1 // pred_fallthru
      _
    %1072 = vsyncpa [#allocation3], 1

</llo_original>
